<compile_context>
chip_gen: v7x
topology: tpu7x:2x2x1
jax: 0.10.0
libtpu: 0.0.40
codegen_flags: <defaults>
</compile_context>

<pallas_src>
import functools

import jax
import jax.numpy as jnp
from jax.experimental import pallas as pl
from jax.experimental.pallas import tpu as pltpu


# Matmul-operand dtype.  float32 tracks the torch f32 reference bit-closely;
# flip to jnp.bfloat16 for ~2x MXU throughput and half the HBM/VMEM traffic
# (accumulation stays f32 via preferred_element_type; LayerNorm and softmax
# statistics are computed in f32 regardless).
_MXU_DTYPE = jnp.float32

_LN_EPS = 1e-5  # torch.nn.LayerNorm default


# ----------------------------------------------------------------------------
# In-kernel helpers
# ----------------------------------------------------------------------------

def _layernorm(x, gamma, beta):
    mu = jnp.mean(x, axis=-1, keepdims=True)
    var = jnp.mean(jnp.square(x - mu), axis=-1, keepdims=True)
    return (x - mu) * jax.lax.rsqrt(var + _LN_EPS) * gamma + beta


def _erf(x):
    # Abramowitz & Stegun 7.1.26, max abs error ~1.5e-7 (≈ f32 roundoff).
    # TODO(synk): lax.erf lowering in Mosaic is not guaranteed, so the exact
    # erf-GELU is emulated with this polynomial (exp/abs/mul only) in-kernel.
    p = 0.3275911
    a1, a2, a3, a4, a5 = (0.254829592, -0.284496736, 1.421413741,
                          -1.453152027, 1.061405429)
    ax = jnp.abs(x)
    t = 1.0 / (1.0 + p * ax)
    poly = ((((a5 * t + a4) * t + a3) * t + a2) * t + a1) * t
    y = 1.0 - poly * jnp.exp(-ax * ax)
    return jnp.where(x >= 0, y, -y)


def _gelu_exact(x):
    return 0.5 * x * (1.0 + _erf(x * 0.7071067811865476))


# ----------------------------------------------------------------------------
# Kernel 1: patch embedding + pos embedding + zero class token
# ----------------------------------------------------------------------------

def _patch_embed_kernel(p_ref, w_ref, b_ref, pos_ref, o_ref):
    # p_ref: (1, P, patch_dims)   o_ref: (1, P+1, D); row 0 = zero class token.
    y = jnp.dot(p_ref[0].astype(_MXU_DTYPE), w_ref[...].astype(_MXU_DTYPE),
                preferred_element_type=jnp.float32)
    y = y + b_ref[...] + pos_ref[...]
    o_ref[0, 0:1, :] = jnp.zeros((1, o_ref.shape[2]), o_ref.dtype)
    o_ref[0, 1:, :] = y.astype(o_ref.dtype)


def patch_embed_pallas(patches, w, b, pos):
    B, P, Din = patches.shape
    D = w.shape[1]
    return pl.pallas_call(
        _patch_embed_kernel,
        out_shape=jax.ShapeDtypeStruct((B, P + 1, D), jnp.float32),
        grid=(B,),
        in_specs=[
            pl.BlockSpec((1, P, Din), lambda i: (i, 0, 0)),
            pl.BlockSpec((Din, D), lambda i: (0, 0)),
            pl.BlockSpec((1, D), lambda i: (0, 0)),
            pl.BlockSpec((P, D), lambda i: (0, 0)),
        ],
        out_specs=pl.BlockSpec((1, P + 1, D), lambda i: (i, 0, 0)),
        compiler_params=pltpu.CompilerParams(dimension_semantics=("parallel",)),
    )(patches, w, b.reshape(1, D), pos)


# ----------------------------------------------------------------------------
# Kernel 2: fused LayerNorm + Linear  (QKV projection, prediction head)
# ----------------------------------------------------------------------------

def _ln_linear_kernel(x_ref, g_ref, beta_ref, w_ref, bias_ref, o_ref):
    xn = _layernorm(x_ref[0], g_ref[...], beta_ref[...])
    y = jnp.dot(xn.astype(_MXU_DTYPE), w_ref[...].astype(_MXU_DTYPE),
                preferred_element_type=jnp.float32) + bias_ref[...]
    o_ref[0] = y.astype(o_ref.dtype)


def ln_linear_pallas(x, gamma, beta, w, bias):
    B, N, Din = x.shape
    Dout = w.shape[1]
    return pl.pallas_call(
        _ln_linear_kernel,
        out_shape=jax.ShapeDtypeStruct((B, N, Dout), jnp.float32),
        grid=(B,),
        in_specs=[
            pl.BlockSpec((1, N, Din), lambda i: (i, 0, 0)),
            pl.BlockSpec((1, Din), lambda i: (0, 0)),
            pl.BlockSpec((1, Din), lambda i: (0, 0)),
            pl.BlockSpec((Din, Dout), lambda i: (0, 0)),
            pl.BlockSpec((1, Dout), lambda i: (0, 0)),
        ],
        out_specs=pl.BlockSpec((1, N, Dout), lambda i: (i, 0, 0)),
        compiler_params=pltpu.CompilerParams(dimension_semantics=("parallel",)),
    )(x, gamma.reshape(1, Din), beta.reshape(1, Din), w, bias.reshape(1, Dout))


# ----------------------------------------------------------------------------
# Kernel 3: attention (all heads) + output projection + residual add
# ----------------------------------------------------------------------------

def _attn_block_kernel(qkv_ref, wout_ref, z_ref, o_ref, *, dh, scale):
    # qkv_ref: (1, H, N, 3*dh) — row-major reinterpretation of the packed QKV
    # projection, identical to torch's qkv.view(B, heads, N, 3, dh); the last
    # axis is laid out [q | k | v], each dh lanes wide.
    qkv = qkv_ref[0]                                   # (H, N, 3*dh)
    q = qkv[:, :, 0 * dh:1 * dh].astype(_MXU_DTYPE)
    k = qkv[:, :, 1 * dh:2 * dh].astype(_MXU_DTYPE)
    v = qkv[:, :, 2 * dh:3 * dh].astype(_MXU_DTYPE)

    s = jnp.einsum('hqd,hkd->hqk', q, k,
                   preferred_element_type=jnp.float32) * scale     # (H, N, N)
    m = jnp.max(s, axis=-1, keepdims=True)
    e = jnp.exp(s - m)
    # exact reciprocal keeps us bit-close to the torch f32 reference;
    # approx=True would move the divide to the (idle) EUP slot.
    p = e * pl.reciprocal(jnp.sum(e, axis=-1, keepdims=True), approx=False)

    o = jnp.einsum('hqk,hkd->hqd', p.astype(_MXU_DTYPE), v,
                   preferred_element_type=jnp.float32)              # (H, N, dh)

    # torch: out.transpose(-3,-2).flatten(-2) @ W_out^T
    #      == sum_h out[h] @ W_out^T[h*dh:(h+1)*dh, :]
    per_head = jnp.einsum('hnd,hdk->hnk', o.astype(_MXU_DTYPE),
                          wout_ref[...].astype(_MXU_DTYPE),
                          preferred_element_type=jnp.float32)       # (H, N, D)
    o_ref[0] = (z_ref[0] + jnp.sum(per_head, axis=0)).astype(o_ref.dtype)


def attention_block_pallas(qkv, w_out, z, *, heads, dh):
    B, N, D = z.shape
    scale = dh ** (-0.5)
    # Free row-major views (no data movement): packed QKV and per-head W_out.
    qkv_v = qkv.reshape(B, heads, N, 3 * dh)
    wout_r = w_out.reshape(heads, dh, D)
    return pl.pallas_call(
        functools.partial(_attn_block_kernel, dh=dh, scale=scale),
        out_shape=jax.ShapeDtypeStruct((B, N, D), jnp.float32),
        grid=(B,),
        in_specs=[
            pl.BlockSpec((1, heads, N, 3 * dh), lambda i: (i, 0, 0, 0)),
            pl.BlockSpec((heads, dh, D), lambda i: (0, 0, 0)),
            pl.BlockSpec((1, N, D), lambda i: (i, 0, 0)),
        ],
        out_specs=pl.BlockSpec((1, N, D), lambda i: (i, 0, 0)),
        compiler_params=pltpu.CompilerParams(dimension_semantics=("parallel",)),
    )(qkv_v, wout_r, z)


# ----------------------------------------------------------------------------
# Kernel 4: fused MLP block (LN + W1 + GELU + W2 + residual)
# ----------------------------------------------------------------------------

def _mlp_block_kernel(z_ref, g_ref, beta_ref, w1_ref, b1_ref, w2_ref, b2_ref,
                      o_ref):
    z = z_ref[0]                                        # (N, D), f32
    xn = _layernorm(z, g_ref[...], beta_ref[...])
    h = jnp.dot(xn.astype(_MXU_DTYPE), w1_ref[...].astype(_MXU_DTYPE),
                preferred_element_type=jnp.float32) + b1_ref[...]
    h = _gelu_exact(h)                                  # stays in VMEM
    y = jnp.dot(h.astype(_MXU_DTYPE), w2_ref[...].astype(_MXU_DTYPE),
                preferred_element_type=jnp.float32) + b2_ref[...]
    o_ref[0] = (z + y).astype(o_ref.dtype)


def mlp_block_pallas(z, gamma, beta, w1, b1, w2, b2):
    B, N, D = z.shape
    Dh = w1.shape[1]
    # NOTE: for large N / mlp_dim add an N-tile grid axis (weight index_map kept
    # constant so W1/W2 stay VMEM-resident) and budget against v7x's 64 MiB VMEM.
    return pl.pallas_call(
        _mlp_block_kernel,
        out_shape=jax.ShapeDtypeStruct((B, N, D), jnp.float32),
        grid=(B,),
        in_specs=[
            pl.BlockSpec((1, N, D), lambda i: (i, 0, 0)),
            pl.BlockSpec((1, D), lambda i: (0, 0)),
            pl.BlockSpec((1, D), lambda i: (0, 0)),
            pl.BlockSpec((D, Dh), lambda i: (0, 0)),
            pl.BlockSpec((1, Dh), lambda i: (0, 0)),
            pl.BlockSpec((Dh, D), lambda i: (0, 0)),
            pl.BlockSpec((1, D), lambda i: (0, 0)),
        ],
        out_specs=pl.BlockSpec((1, N, D), lambda i: (i, 0, 0)),
        compiler_params=pltpu.CompilerParams(dimension_semantics=("parallel",)),
    )(z, gamma.reshape(1, D), beta.reshape(1, D), w1, b1.reshape(1, Dh),
      w2, b2.reshape(1, D))


# ----------------------------------------------------------------------------
# Parameters (deterministic; shapes follow VisionTransformer.__init__)
# ----------------------------------------------------------------------------

def init_params(key, *, dim, depth, heads, mlp_dim, patch_dims, num_patches,
                num_classes):
    dh = dim // heads
    dim_inner = 3 * heads * dh
    keys = list(jax.random.split(key, 64))
    it = iter(keys)

    def w(din, dout):
        return jax.random.normal(next(it), (din, dout), jnp.float32) * 0.02

    def b(d):
        return jax.random.normal(next(it), (d,), jnp.float32) * 0.02

    params = {
        "patch_w": w(patch_dims, dim),
        "patch_b": b(dim),
        "pos": jax.random.normal(next(it), (num_patches, dim), jnp.float32) * 0.02,
        "head_ln_g": jnp.ones((dim,), jnp.float32),
        "head_ln_b": jnp.zeros((dim,), jnp.float32),
        "head_w": w(dim, num_classes),
        "head_b": b(num_classes),
        "layers": [],
    }
    for _ in range(depth):
        params["layers"].append({
            "attn_ln_g": jnp.ones((dim,), jnp.float32),
            "attn_ln_b": jnp.zeros((dim,), jnp.float32),
            "w_qkv": w(dim, dim_inner),                # bias=False in torch
            "w_out": w(heads * dh, dim),               # bias=False in torch
            "mlp_ln_g": jnp.ones((dim,), jnp.float32),
            "mlp_ln_b": jnp.zeros((dim,), jnp.float32),
            "w1": w(dim, mlp_dim), "b1": b(mlp_dim),
            "w2": w(mlp_dim, dim), "b2": b(dim),
        })
    return params


# ----------------------------------------------------------------------------
# Forward pass (mirrors VisionTransformer.forward with num_convs=0, droprate=0)
# ----------------------------------------------------------------------------

def vit_forward(params, x, *, patch_size, heads, dim):
    B, C, H, W = x.shape
    ph = pw = patch_size
    nh, nw = H // ph, W // pw
    num_patches = nh * nw

    # _to_patches: unfold(2).unfold(3) -> view -> permute -> flatten (layout glue)
    p = x.reshape(B, C, nh, ph, nw, pw).transpose(0, 1, 2, 4, 3, 5)    # (B,C,nh,nw,ph,pw)
    p = p.reshape(B, C, num_patches, ph, pw).transpose(0, 2, 3, 4, 1)  # (B,np,ph,pw,C)
    patches_flat = p.reshape(B, num_patches, ph * pw * C)

    # patch embedding + pos embedding + zero class token, fused
    z = patch_embed_pallas(patches_flat, params["patch_w"], params["patch_b"],
                           params["pos"])                               # (B, N, D)
    dh = dim // heads
    qkv_zero_bias = jnp.zeros((3 * heads * dh,), jnp.float32)

    for lp in params["layers"]:
        # attention sub-block: z = z + to_out(attn(LN(z)))
        qkv = ln_linear_pallas(z, lp["attn_ln_g"], lp["attn_ln_b"],
                               lp["w_qkv"], qkv_zero_bias)              # (B,N,3D)
        z = attention_block_pallas(qkv, lp["w_out"], z, heads=heads, dh=dh)
        # MLP sub-block: z = z + W2(gelu(W1(LN(z))))
        z = mlp_block_pallas(z, lp["mlp_ln_g"], lp["mlp_ln_b"],
                             lp["w1"], lp["b1"], lp["w2"], lp["b2"])

    # prediction head on the class token (dropout p=0.0 == identity).
    # Pad the classifier to a lane-dense 128-wide output and slice outside.
    num_classes = params["head_w"].shape[1]
    pad = (-num_classes) % 128
    head_w = jnp.pad(params["head_w"], ((0, 0), (0, pad)))
    head_b = jnp.pad(params["head_b"], ((0, pad),))
    ct = z[:, 0:1, :]                                                   # (B,1,D)
    logits = ln_linear_pallas(ct, params["head_ln_g"], params["head_ln_b"],
                              head_w, head_b)                           # (B,1,128)
    return logits[:, 0, :num_classes]                                   # (B, classes)


# ----------------------------------------------------------------------------

if __name__ == "__main__":
    key = jax.random.PRNGKey(0)
    k_x, k_p = jax.random.split(key)

    # Small, self-consistent configuration (num_convs=0 => regular ViT).
    # dim/mlp_dim chosen as multiples of 128 so all kernel stores are lane-dense.
    B, C, H, W = 2, 4, 16, 16
    patch_size = 4
    dim, depth, heads, mlp_dim, num_classes = 128, 2, 4, 256, 10

    num_patches = (H // patch_size) * (W // patch_size)                 # 16
    patch_dims = patch_size * patch_size * C                            # 64

    x = jax.random.normal(k_x, (B, C, H, W), jnp.float32)
    params = init_params(
        k_p, dim=dim, depth=depth, heads=heads, mlp_dim=mlp_dim,
        patch_dims=patch_dims, num_patches=num_patches,
        num_classes=num_classes)

    out = vit_forward(params, x, patch_size=patch_size, heads=heads, dim=dim)
    out = jax.block_until_ready(out)
    assert out.shape == (B, num_classes), out.shape
    assert bool(jnp.all(jnp.isfinite(out)))
    print("KERNEL_OK")
</pallas_src>

<mosaic_0001>
module attributes {stable_mosaic.version = 11 : i64} {
  func.func @_patch_embed_kernel(%arg0: i32, %arg1: memref<1x16x64xf32, #tpu.memory_space<vmem>>, %arg2: memref<64x128xf32, #tpu.memory_space<vmem>>, %arg3: memref<1x128xf32, #tpu.memory_space<vmem>>, %arg4: memref<16x128xf32, #tpu.memory_space<vmem>>, %arg5: memref<1x17x128xf32, #tpu.memory_space<vmem>>) attributes {dimension_semantics = [#tpu.dimension_semantics<parallel>], iteration_bounds = array<i64: 2>, scalar_prefetch = 0 : i64, scratch_operands = 0 : i64, tpu.core_type = #tpu.core_type<tc>, window_params = [{transform_indices = @transform_0, window_bounds = array<i64: 1, 16, 64>}, {pipeline_mode = #tpu.pipeline_mode<synchronous>, transform_indices = @transform_1, window_bounds = array<i64: 64, 128>}, {pipeline_mode = #tpu.pipeline_mode<synchronous>, transform_indices = @transform_2, window_bounds = array<i64: 1, 128>}, {pipeline_mode = #tpu.pipeline_mode<synchronous>, transform_indices = @transform_3, window_bounds = array<i64: 16, 128>}, {transform_indices = @transform_4, window_bounds = array<i64: 1, 17, 128>}]} {
    %c0 = arith.constant 0 : index
    %c0_0 = arith.constant 0 : index
    %c0_1 = arith.constant 0 : index
    %0 = vector.load %arg1[%c0, %c0_0, %c0_1] : memref<1x16x64xf32, #tpu.memory_space<vmem>>, vector<1x16x64xf32>
    %1 = vector.shape_cast %0 : vector<1x16x64xf32> to vector<16x64xf32>
    %c0_2 = arith.constant 0 : index
    %c0_3 = arith.constant 0 : index
    %2 = vector.load %arg2[%c0_2, %c0_3] : memref<64x128xf32, #tpu.memory_space<vmem>>, vector<64x128xf32>
    %cst = arith.constant dense<0.000000e+00> : vector<16x128xf32>
    %3 = tpu.matmul %1, %2, %cst {dimension_numbers = #tpu.dot_dimension_numbers<[1], [0], [0], [1], [0, 0, 1, 1], [], []>} : vector<16x64xf32>, vector<64x128xf32>, vector<16x128xf32> -> vector<16x128xf32>
    %c0_4 = arith.constant 0 : index
    %c0_5 = arith.constant 0 : index
    %4 = vector.load %arg3[%c0_4, %c0_5] : memref<1x128xf32, #tpu.memory_space<vmem>>, vector<1x128xf32>
    %5 = vector.broadcast %4 : vector<1x128xf32> to vector<16x128xf32>
    %6 = arith.addf %3, %5 : vector<16x128xf32>
    %c0_6 = arith.constant 0 : index
    %c0_7 = arith.constant 0 : index
    %7 = vector.load %arg4[%c0_6, %c0_7] : memref<16x128xf32, #tpu.memory_space<vmem>>, vector<16x128xf32>
    %8 = arith.addf %6, %7 : vector<16x128xf32>
    %cst_8 = arith.constant 0.000000e+00 : f32
    %9 = vector.broadcast %cst_8 : f32 to vector<1x128xf32>
    %c0_9 = arith.constant 0 : index
    %c0_10 = arith.constant 0 : index
    %c0_11 = arith.constant 0 : index
    %10 = vector.load %arg5[%c0_9, %c0_10, %c0_11] : memref<1x17x128xf32, #tpu.memory_space<vmem>>, vector<1x1x128xf32>
    %11 = vector.shape_cast %10 : vector<1x1x128xf32> to vector<1x128xf32>
    %12 = vector.shape_cast %9 : vector<1x128xf32> to vector<1x1x128xf32>
    tpu.vector_store %arg5[%c0_9, %c0_10, %c0_11], %12 {strides = array<i32>} : memref<1x17x128xf32, #tpu.memory_space<vmem>>, vector<1x1x128xf32>,
    %c0_12 = arith.constant 0 : index
    %c1 = arith.constant 1 : index
    %c0_13 = arith.constant 0 : index
    %13 = vector.load %arg5[%c0_12, %c1, %c0_13] : memref<1x17x128xf32, #tpu.memory_space<vmem>>, vector<1x16x128xf32>
    %14 = vector.shape_cast %13 : vector<1x16x128xf32> to vector<16x128xf32>
    %15 = vector.shape_cast %8 : vector<16x128xf32> to vector<1x16x128xf32>
    tpu.vector_store %arg5[%c0_12, %c1, %c0_13], %15 {strides = array<i32>} : memref<1x17x128xf32, #tpu.memory_space<vmem>>, vector<1x16x128xf32>,
    return
  }
  func.func @transform_0(%arg0: i32) -> (i32, i32, i32) {
    %c0_i32 = arith.constant 0 : i32
    %c0_i32_0 = arith.constant 0 : i32
    %c0_i32_1 = arith.constant 0 : i32
    return %arg0, %c0_i32, %c0_i32_0 : i32, i32, i32
  }
  func.func @transform_1(%arg0: i32) -> (i32, i32) {
    %c0_i32 = arith.constant 0 : i32
    %c0_i32_0 = arith.constant 0 : i32
    %c0_i32_1 = arith.constant 0 : i32
    return %c0_i32, %c0_i32_0 : i32, i32
  }
  func.func @transform_2(%arg0: i32) -> (i32, i32) {
    %c0_i32 = arith.constant 0 : i32
    %c0_i32_0 = arith.constant 0 : i32
    %c0_i32_1 = arith.constant 0 : i32
    return %c0_i32, %c0_i32_0 : i32, i32
  }
  func.func @transform_3(%arg0: i32) -> (i32, i32) {
    %c0_i32 = arith.constant 0 : i32
    %c0_i32_0 = arith.constant 0 : i32
    %c0_i32_1 = arith.constant 0 : i32
    return %c0_i32, %c0_i32_0 : i32, i32
  }
  func.func @transform_4(%arg0: i32) -> (i32, i32, i32) {
    %c0_i32 = arith.constant 0 : i32
    %c0_i32_0 = arith.constant 0 : i32
    %c0_i32_1 = arith.constant 0 : i32
    return %arg0, %c0_i32, %c0_i32_0 : i32, i32, i32
  }
}

</mosaic_0001>

<llo_original>
// kernel: tpu_custom_call.1
$region0: #{tpu_custom_call.1}
  #allocation0 [shape = 'u32[]', space=smem, size = 0x4, offset = 0x4, fixed_abs, tag = 'smem constant byte address 0x4 - core index']
  #allocation1 [shape = 'u32[144,128]{1,0:T(1,128)}', space=vmem, size = 0x12000, scoped, tag = 'internal scratch']
  %s0 = inlined_call_operand.hbm [shape: f32[2,16,64], index: 0, kind: input, shape index: {}]
  %s1 = inlined_call_operand.hbm [shape: f32[64,128], index: 1, kind: input, shape index: {}]
  %s2 = inlined_call_operand.vmem [shape: f32[1,128], index: 2, kind: input, shape index: {}]
  %s3 = inlined_call_operand.hbm [shape: f32[16,128], index: 3, kind: input, shape index: {}]
  %s4 = inlined_call_operand.vmem [shape: f32[2,17,128], index: 4, kind: output, shape index: {}]
  %s5 = sld [smem:[#allocation0]]
  $region61: #{tpu_custom_call.1} parent=0
    _
  %s7 = ssub.s32 1, %s5
  %s8 = scalar_select 0, %s7, %s5
  $region1: #{tpu_custom_call.1} parent=0
    #allocation2 [shape = 'u8[16384]{0}', space=vmem, size = 0x4000, scoped, tag = 'input window, operand 0']
    #allocation3 [shape = 's32[2]{0}', space=sflag, size = 0x8, scoped, tag = 'scoped memory for tpu_custom_call.1']
    #allocation4 [shape = 'u8[32768]{0}', space=vmem, size = 0x8000, scoped, tag = 'input window, operand 1, single buffered']
    #allocation5 [shape = 's32[1]{0}', space=sflag, size = 0x4, scoped, tag = 'scoped memory for tpu_custom_call.1']
    #allocation6 [shape = 'u8[8192]{0}', space=vmem, size = 0x2000, scoped, tag = 'input window, operand 3, single buffered']
    %9 = vsyncpa [#allocation3], 0
    %s10 = scalar_lea.sflag [#allocation3], 1
    %11 = vsyncpa %s10, 0
    %12 = vsyncpa [#allocation5], 0
    loop: start=0, step=1, limit=4
    $region2: #{tpu_custom_call.1} parent=1 // loop_pre_header
      _
    $region3: #{tpu_custom_call.1} parent=1 // loop_header
      %s14 = sphi 0, %s18
      %p15 = scmp.ge.s32.totalorder %s14, 4
      %s24 = sphi 0, %s26
      %s27 = sphi 0, %s24
      %s28 = sphi 0, %s27
      %s44 = sphi 0, %s28
      %s48 = sphi 0, %s48
      %s50 = sphi 0, %s48
      %s51 = sphi 0, %s50
      %s65 = sphi 0, %s51
      %s69 = sphi 0, %s69
      %s71 = sphi 0, %s69
      %s72 = sphi 0, %s71
      %s86 = sphi 0, %s72
      %s90 = sphi 0, %s90
      %s92 = sphi 0, %s90
      %s93 = sphi 0, %s92
      %s107 = sphi 0, %s93
      %s113 = sphi 0, %s115
      %s116 = sphi 0, %s113
      %s117 = sphi 0, %s116
      %s133 = sphi 0, %s117
    $region4: #{tpu_custom_call.1} parent=1 // loop_header_branch
      %17 = sbr.rel (%p15) target = $region8
    $region5: #{tpu_custom_call.1} parent=1 // loop_body
      %s19 = ssub.s32 %s14, 1
      %s20 = ssub.s32 %s14, 2
      %s21 = sadd.s32 %s14, 1
      %s22 = ssub.s32 %s14, %s21
      %p23 = scmp.eq.s32.totalorder %s22, 0
      %s25 = sadd.s32 %s24, 1
      %s26 = scalar_select %p23, %s24, %s25
      %p29 = pneg %p23
      %p30 = scmp.eq.s32.totalorder %s14, 1
      %p31 = por %p29, %p30
      %p32 = scmp.ne.s32.totalorder %s24, %s27
      %p33 = scmp.eq.s32.totalorder %s14, 0
      %p34 = por %p32, %p33
      %p35 = scmp.ne.s32.totalorder %s24, %s27
      %p36 = scmp.eq.s32.totalorder %s19, 1
      %p37 = por %p35, %p36
      %p38 = scmp.ne.s32.totalorder %s27, %s28
      %p39 = scmp.eq.s32.totalorder %s19, 0
      %p40 = por %p38, %p39
      %p41 = scmp.ne.s32.totalorder %s27, %s28
      %p42 = scmp.eq.s32.totalorder %s20, 1
      %p43 = por %p41, %p42
      %p45 = scmp.ne.s32.totalorder %s28, %s44
      %p46 = scmp.eq.s32.totalorder %s20, 0
      %p47 = por %p45, %p46
      %s49 = sadd.s32 %s48, 1
      %p52 = scmp.eq.s32.totalorder %s14, 1
      %p53 = scmp.ne.s32.totalorder %s48, %s50
      %p54 = scmp.eq.s32.totalorder %s14, 0
      %p55 = por %p53, %p54
      %p56 = scmp.ne.s32.totalorder %s48, %s50
      %p57 = scmp.eq.s32.totalorder %s19, 1
      %p58 = por %p56, %p57
      %p59 = scmp.ne.s32.totalorder %s50, %s51
      %p60 = scmp.eq.s32.totalorder %s19, 0
      %p61 = por %p59, %p60
      %p62 = scmp.ne.s32.totalorder %s50, %s51
      %p63 = scmp.eq.s32.totalorder %s20, 1
      %p64 = por %p62, %p63
      %p66 = scmp.ne.s32.totalorder %s51, %s65
      %p67 = scmp.eq.s32.totalorder %s20, 0
      %p68 = por %p66, %p67
      %s70 = sadd.s32 %s69, 1
      %p73 = scmp.eq.s32.totalorder %s14, 1
      %p74 = scmp.ne.s32.totalorder %s69, %s71
      %p75 = scmp.eq.s32.totalorder %s14, 0
      %p76 = por %p74, %p75
      %p77 = scmp.ne.s32.totalorder %s69, %s71
      %p78 = scmp.eq.s32.totalorder %s19, 1
      %p79 = por %p77, %p78
      %p80 = scmp.ne.s32.totalorder %s71, %s72
      %p81 = scmp.eq.s32.totalorder %s19, 0
      %p82 = por %p80, %p81
      %p83 = scmp.ne.s32.totalorder %s71, %s72
      %p84 = scmp.eq.s32.totalorder %s20, 1
      %p85 = por %p83, %p84
      %p87 = scmp.ne.s32.totalorder %s72, %s86
      %p88 = scmp.eq.s32.totalorder %s20, 0
      %p89 = por %p87, %p88
      %s91 = sadd.s32 %s90, 1
      %p94 = scmp.eq.s32.totalorder %s14, 1
      %p95 = scmp.ne.s32.totalorder %s90, %s92
      %p96 = scmp.eq.s32.totalorder %s14, 0
      %p97 = por %p95, %p96
      %p98 = scmp.ne.s32.totalorder %s90, %s92
      %p99 = scmp.eq.s32.totalorder %s19, 1
      %p100 = por %p98, %p99
      %p101 = scmp.ne.s32.totalorder %s92, %s93
      %p102 = scmp.eq.s32.totalorder %s19, 0
      %p103 = por %p101, %p102
      %p104 = scmp.ne.s32.totalorder %s92, %s93
      %p105 = scmp.eq.s32.totalorder %s20, 1
      %p106 = por %p104, %p105
      %p108 = scmp.ne.s32.totalorder %s93, %s107
      %p109 = scmp.eq.s32.totalorder %s20, 0
      %p110 = por %p108, %p109
      %s111 = ssub.s32 %s14, %s21
      %p112 = scmp.eq.s32.totalorder %s111, 0
      %s114 = sadd.s32 %s113, 1
      %s115 = scalar_select %p112, %s113, %s114
      %p118 = pneg %p112
      %p119 = scmp.eq.s32.totalorder %s14, 1
      %p120 = por %p118, %p119
      %p121 = scmp.ne.s32.totalorder %s113, %s116
      %p122 = scmp.eq.s32.totalorder %s14, 0
      %p123 = por %p121, %p122
      %p124 = scmp.ne.s32.totalorder %s113, %s116
      %p125 = scmp.eq.s32.totalorder %s19, 1
      %p126 = por %p124, %p125
      %p127 = scmp.ne.s32.totalorder %s116, %s117
      %p128 = scmp.eq.s32.totalorder %s19, 0
      %p129 = por %p127, %p128
      %p130 = scmp.ne.s32.totalorder %s116, %s117
      %p131 = scmp.eq.s32.totalorder %s20, 1
      %p132 = por %p130, %p131
      %p134 = scmp.ne.s32.totalorder %s117, %s133
      %p135 = scmp.eq.s32.totalorder %s20, 0
      %p136 = por %p134, %p135
      %p137 = scmp.le.s32.totalorder 1, %s14
      %p138 = scmp.lt.s32.totalorder %s14, 3
      %p139 = pnand %p137, %p138
      %p140 = pneg %p139
      // Predicated region
      $region9: #{tpu_custom_call.1} parent=5 // pred_check
        _
      $region10: #{tpu_custom_call.1} parent=5 // pred_check_branch
        %142 = sbr.rel (%p139) target = $region12
      $region11: #{tpu_custom_call.1} parent=5 // pred_region
        %s143 = ssub.s32 %s14, 1
        // Predicated region
        $region13: #{tpu_custom_call.1} parent=11 // pred_check
          %p144 = pneg %p61
        $region14: #{tpu_custom_call.1} parent=11 // pred_check_branch
          %146 = sbr.rel (%p144) target = $region16
        $region15: #{tpu_custom_call.1} parent=11 // pred_region
          %s148 = ssub.s32 1024, 1024
          %149 = vsyncadd [#allocation5], %s148
          %s150 = sshll.u32 [#allocation4], 4
          %s151 = int_to_ptr.vmem [resolvable:$true] %s150
          %156 = dma.hbm_to_vmem [thread:$0]  %s1, 1024, %s151, [#allocation5], 128, 128, 8
        $region16: #{tpu_custom_call.1} parent=11 // pred_fallthru
          _
        // Predicated region
        $region17: #{tpu_custom_call.1} parent=11 // pred_check
          %p157 = pneg %p82
        $region18: #{tpu_custom_call.1} parent=11 // pred_check_branch
          %159 = sbr.rel (%p157) target = $region20
        $region19: #{tpu_custom_call.1} parent=11 // pred_region
          _
        $region20: #{tpu_custom_call.1} parent=11 // pred_fallthru
          _
        // Predicated region
        $region21: #{tpu_custom_call.1} parent=11 // pred_check
          %p160 = pneg %p103
        $region22: #{tpu_custom_call.1} parent=11 // pred_check_branch
          %162 = sbr.rel (%p160) target = $region24
        $region23: #{tpu_custom_call.1} parent=11 // pred_region
          %s164 = ssub.s32 256, 256
          %165 = vsyncadd [#allocation5], %s164
          %s166 = sshll.u32 [#allocation6], 4
          %s167 = int_to_ptr.vmem [resolvable:$true] %s166
          %172 = dma.hbm_to_vmem [thread:$0]  %s3, 256, %s167, [#allocation5], 128, 128, 8
        $region24: #{tpu_custom_call.1} parent=11 // pred_fallthru
          _
      $region12: #{tpu_custom_call.1} parent=5 // pred_fallthru
        _
      %p173 = scmp.lt.s32.totalorder %s14, 2
      // Predicated region
      $region25: #{tpu_custom_call.1} parent=5 // pred_check
        %p174 = pneg %p173
      $region26: #{tpu_custom_call.1} parent=5 // pred_check_branch
        %176 = sbr.rel (%p174) target = $region28
      $region27: #{tpu_custom_call.1} parent=5 // pred_region
        // Predicated region
        $region29: #{tpu_custom_call.1} parent=27 // pred_check
          %p177 = pneg %p34
        $region30: #{tpu_custom_call.1} parent=27 // pred_check_branch
          %179 = sbr.rel (%p177) target = $region32
        $region31: #{tpu_custom_call.1} parent=27 // pred_region
          %s180 = sand.u32 %s24, 1
          %s181 = scalar_lea.sflag [#allocation3], %s180
          %s182 = sand.u32 %s24, 1
          %s183 = smul.addr %s182, 16
          %s184 = scalar_lea.vmem [#allocation2], %s183
          %s186 = ssub.s32 256, 256
          %187 = vsyncadd %s181, %s186
          %s188 = smul.addr %s14, 2
          %s189 = smul.addr %s188, 128
          %s190 = scalar_lea.hbm %s0, %s189
          %s191 = sshll.u32 %s184, 4
          %s192 = int_to_ptr.vmem [resolvable:$true] %s191
          %197 = dma.hbm_to_vmem [thread:$0]  %s190, 256, %s192, %s181, 128, 128, 8
        $region32: #{tpu_custom_call.1} parent=27 // pred_fallthru
          _
      $region28: #{tpu_custom_call.1} parent=5 // pred_fallthru
        _
      %p198 = scmp.le.s32.totalorder 1, %s14
      %p199 = scmp.lt.s32.totalorder %s14, 3
      %p200 = pnand %p198, %p199
      %p201 = pneg %p200
      // Predicated region
      $region33: #{tpu_custom_call.1} parent=5 // pred_check
        _
      $region34: #{tpu_custom_call.1} parent=5 // pred_check_branch
        %203 = sbr.rel (%p200) target = $region36
      $region35: #{tpu_custom_call.1} parent=5 // pred_region
        %s204 = ssub.s32 %s14, 1
        %s205 = sand.u32 %s27, 1
        %s206 = scalar_lea.sflag [#allocation3], %s205
        %s207 = sand.u32 %s27, 1
        %s208 = smul.addr %s207, 16
        %s209 = scalar_lea.vmem [#allocation2], %s208
        // Predicated region
        $region37: #{tpu_custom_call.1} parent=35 // pred_check
          %p210 = pneg %p40
        $region38: #{tpu_custom_call.1} parent=35 // pred_check_branch
          %212 = sbr.rel (%p210) target = $region40
        $region39: #{tpu_custom_call.1} parent=35 // pred_region
          %213 = dma.done %s206, 256
        $region40: #{tpu_custom_call.1} parent=35 // pred_fallthru
          _
        // Predicated region
        $region41: #{tpu_custom_call.1} parent=35 // pred_check
          %p214 = pneg %p61
        $region42: #{tpu_custom_call.1} parent=35 // pred_check_branch
          %216 = sbr.rel (%p214) target = $region44
        $region43: #{tpu_custom_call.1} parent=35 // pred_region
          %217 = dma.done [#allocation5], 1024
        $region44: #{tpu_custom_call.1} parent=35 // pred_fallthru
          _
        // Predicated region
        $region45: #{tpu_custom_call.1} parent=35 // pred_check
          %p218 = pneg %p103
        $region46: #{tpu_custom_call.1} parent=35 // pred_check_branch
          %220 = sbr.rel (%p218) target = $region48
        $region47: #{tpu_custom_call.1} parent=35 // pred_region
          %221 = dma.done [#allocation5], 256
        $region48: #{tpu_custom_call.1} parent=35 // pred_fallthru
          _
        %s222 = sand.u32 %s27, 1
        %s223 = scalar_lea.sflag [#allocation3], %s222
        %s224 = sand.u32 %s27, 1
        %s225 = smul.addr %s224, 16
        %s226 = scalar_lea.vmem [#allocation2], %s225
        %p227 = pneg %p40
        %p228 = pneg %p37
        %p229 = pneg %p61
        %p230 = pneg %p58
        %p231 = pneg %p82
        %p232 = pneg %p79
        %p233 = pneg %p103
        %p234 = pneg %p100
        %p235 = pneg %p129
        %p236 = pneg %p126
        %p237 = scmp.lt.s32.totalorder %s19, 1
        %s238 = scalar_select %p237, %s19, 1
        %s239 = smul.addr %s238, 3
        %s240 = smul.addr %s239, 8
        %s241 = scalar_lea.vmem %s4, %s240
        %p242 = scmp.lt.s32.totalorder %s19, 1
        %s243 = scalar_select %p242, %s19, 1
        %s244 = smul.addr %s243, 3
        %s245 = smul.addr %s244, 8
        %s246 = scalar_lea.vmem %s4, %s245
        %v247 = vld [vmem:[%s209] sm:$0xff]
        %v248 = vld [vmem:[%s209 + $0x8] sm:$0xff]
        %v249 = vld [vmem:[#allocation4] sm:$0xff]
        %v250 = vld [vmem:[#allocation4 + $0x8] sm:$0xff]
        %v251 = vld [vmem:[#allocation4 + $0x10] sm:$0xff]
        %v252 = vld [vmem:[#allocation4 + $0x18] sm:$0xff]
        %v253 = vld [vmem:[#allocation4 + $0x20] sm:$0xff]
        %v254 = vld [vmem:[#allocation4 + $0x28] sm:$0xff]
        %v255 = vld [vmem:[#allocation4 + $0x30] sm:$0xff]
        %v256 = vld [vmem:[#allocation4 + $0x38] sm:$0xff]
        %v257 = vld [vmem:[%s2] sm:$0x1]
        %v259 = vlaneseq
        %v260 = vshrl.u32 %v259, 7
        %v261 = vsub.s32 0, %v260
        %v262 = vrot.slane %v257, %v261
        %vm264 = vcmask 523264
        %v266 = vsel %vm264, %v247, 0
        %v269 = vsel %vm264, %v248, 0
        %271 = vmatprep.subr.mxu0 0.0
        %272 = vmatpush1.msra.mxu0 %v249
        %273 = vmatprep.subr.mxu0 0.0
        %274 = vmatpush1.msra.mxu0 %v250
        %275 = vmatprep.subr.mxu0 0.0
        %276 = vmatpush1.msra.mxu0 %v251
        %277 = vmatprep.subr.mxu0 0.0
        %278 = vmatpush1.msra.mxu0 %v252
        %279 = vmatprep.subr.mxu0 0.0
        %280 = vmatpush1.msra.mxu0 %v253
        %281 = vmatprep.subr.mxu0 0.0
        %282 = vmatpush1.msra.mxu0 %v254
        %283 = vmatprep.subr.mxu0 0.0
        %284 = vmatpush1.msra.mxu0 %v255
        %285 = vmatprep.subr.mxu0 0.0
        %286 = vmatpush1.msra.mxu0 %v256
        %287 = vmatprep.subr.mxu0 0.0
        %288 = vmatpush1.msra.mxu0 0.0
        %289 = vmatprep.subr.mxu0 0.0
        %290 = vmatpush1.msra.mxu0 0.0
        %291 = vmatprep.subr.mxu0 0.0
        %292 = vmatpush1.msra.mxu0 0.0
        %293 = vmatprep.subr.mxu0 0.0
        %294 = vmatpush1.msra.mxu0 0.0
        %295 = vmatprep.subr.mxu0 0.0
        %296 = vmatpush1.msra.mxu0 0.0
        %297 = vmatprep.subr.mxu0 0.0
        %298 = vmatpush1.msra.mxu0 0.0
        %299 = vmatprep.subr.mxu0 0.0
        %300 = vmatpush1.msra.mxu0 0.0
        %301 = vmatprep.subr.mxu0 0.0
        %302 = vmatpush1.msra.mxu0 0.0
        %303 = vmatprep.subr.mxu0 0.0
        %304 = vmatpush1.msra.mxu0 0.0
        %305 = vmatprep.subr.mxu0 0.0
        %306 = vmatpush1.msra.mxu0 0.0
        %307 = vmatprep.subr.mxu0 0.0
        %308 = vmatpush1.msra.mxu0 0.0
        %309 = vmatprep.subr.mxu0 0.0
        %310 = vmatpush1.msra.mxu0 0.0
        %311 = vmatprep.subr.mxu0 0.0
        %312 = vmatpush1.msra.mxu0 0.0
        %313 = vmatprep.subr.mxu0 0.0
        %314 = vmatpush1.msra.mxu0 0.0
        %315 = vmatprep.subr.mxu0 0.0
        %316 = vmatpush1.msra.mxu0 0.0
        %317 = vmatprep.subr.mxu0 0.0
        %318 = vmatpush1.msra.mxu0 0.0
        %319 = vmatprep.subr.mxu0 0.0
        %320 = vmatpush1.msra.mxu0 0.0
        %321 = vmatprep.subr.mxu0 0.0
        %322 = vmatpush1.msra.mxu0 0.0
        %323 = vmatprep.subr.mxu0 0.0
        %324 = vmatpush1.msra.mxu0 0.0
        %325 = vmatprep.subr.mxu0 0.0
        %326 = vmatpush1.msra.mxu0 0.0
        %327 = vmatprep.subr.mxu0 0.0
        %328 = vmatpush1.msra.mxu0 0.0
        %329 = vmatprep.subr.mxu0 0.0
        %330 = vmatpush1.msra.mxu0 0.0
        %331 = vmatprep.subr.mxu0 0.0
        %332 = vmatpush1.msra.mxu0 0.0
        %333 = vmatprep.subr.mxu0 0.0
        %334 = vmatpush1.msra.mxu0 0.0
        %335 = vmatprep.mubr.f32.mxu0 0.0
        %336 = vmatmul.mubr.f32.gmra.mrb[0].mxu0 %v266
        %v337 = vpop.f32.mrb[0].mxu0
        %v338 = vadd.f32 %v262, %v337
        %v339 = vpop.f32.mrb[0].mxu0
        %340 = vmatprep.mubr.f32.mxu0 0.0
        %341 = vmatmul.mubr.f32.gmra.mrb[0].mxu0 %v269
        %v342 = vpop.f32.mrb[0].mxu0
        %v343 = vadd.f32 %v262, %v342
        %v344 = vpop.f32.mrb[0].mxu0
        %345 = vdwg.mxu0
        %v346 = vld [vmem:[#allocation6] sm:$0xff]
        %v347 = vld [vmem:[#allocation6 + $0x8] sm:$0xff]
        %v348 = vadd.f32 %v338, %v346
        %v349 = vadd.f32 %v343, %v347
        %350 = vst [vmem:[%s246] sm:$0x1] 0.0
        %351 = vst [vmem:[%s246 + $0x1] sm:$0xff] %v348
        %352 = vst [vmem:[%s246 + $0x9] sm:$0xff] %v349
        %p353 = scmp.lt.s32.totalorder %s19, 1
        %s354 = scalar_select %p353, %s19, 1
        %s355 = smul.addr %s354, 3
        %s356 = smul.addr %s355, 8
        %s357 = scalar_lea.vmem %s4, %s356
        // Predicated region
        $region49: #{tpu_custom_call.1} parent=35 // pred_check
          %p358 = pneg %p126
        $region50: #{tpu_custom_call.1} parent=35 // pred_check_branch
          %360 = sbr.rel (%p358) target = $region52
        $region51: #{tpu_custom_call.1} parent=35 // pred_region
          _
        $region52: #{tpu_custom_call.1} parent=35 // pred_fallthru
          _
      $region36: #{tpu_custom_call.1} parent=5 // pred_fallthru
        _
      %p361 = scmp.le.s32.totalorder 2, %s14
      // Predicated region
      $region53: #{tpu_custom_call.1} parent=5 // pred_check
        %p362 = pneg %p361
      $region54: #{tpu_custom_call.1} parent=5 // pred_check_branch
        %364 = sbr.rel (%p362) target = $region56
      $region55: #{tpu_custom_call.1} parent=5 // pred_region
        %s365 = ssub.s32 %s14, 2
        // Predicated region
        $region57: #{tpu_custom_call.1} parent=55 // pred_check
          %p366 = pneg %p132
        $region58: #{tpu_custom_call.1} parent=55 // pred_check_branch
          %368 = sbr.rel (%p366) target = $region60
        $region59: #{tpu_custom_call.1} parent=55 // pred_region
          %p369 = scmp.lt.s32.totalorder %s20, 1
          %s370 = scalar_select %p369, %s20, 1
          %s371 = smul.addr %s370, 3
          %s372 = smul.addr %s371, 8
          %s373 = scalar_lea.vmem %s4, %s372
        $region60: #{tpu_custom_call.1} parent=55 // pred_fallthru
          _
      $region56: #{tpu_custom_call.1} parent=5 // pred_fallthru
        _
    $region6: #{tpu_custom_call.1} parent=1 // loop_footer
      %s18 = sadd.s32 1, %s14
    $region7: #{tpu_custom_call.1} parent=1 // loop_footer_branch
      %13 = sbr.rel target = $region3
    $region8: #{tpu_custom_call.1} parent=1 // loop_exit
      _
    %374 = vsyncpa [#allocation3], 1
    %s375 = scalar_lea.sflag [#allocation3], 1
    %376 = vsyncpa %s375, 1
    %377 = vsyncpa [#allocation5], 1

</llo_original>
